<compile_context>
chip_gen: v6e
topology: v6e:2x2x1
jax: 0.10.0
libtpu: 0.0.40
codegen_flags: <defaults>
</compile_context>

<pallas_src>
import jax
import jax.numpy as jnp
from jax.experimental import pallas as pl
from jax.experimental.pallas import tpu as pltpu

IN_FEATURES = 8
OUT_FEATURES = 8
PACK = 16                       # logical rows packed per 128-lane row
LANES = PACK * OUT_FEATURES     # 128

_C1 = 0.7978845608028654        # sqrt(2/pi)
_C2 = _C1 * 0.044715            # folded cubic coefficient


def _gelu_linear_kernel(x_ref, w_ref, b_ref, o_ref):
    x = x_ref[...]                                    # (TM, 128)
    w = w_ref[...]                                    # (128, 128) block-diag W^T
    b = b_ref[...]                                    # (1, 128)

    v1 = jnp.dot(x, w, preferred_element_type=jnp.float32) + b
    u = v1 * v1
    # v4 = (v1 + v1^3 * 0.044715) * sqrt(2/pi), constants folded.
    v4 = v1 * _C1 + (v1 * u) * _C2
    o_ref[...] = ((0.5 * v1) * (jnp.tanh(v4) + 1.0)).astype(o_ref.dtype)


def _round_up(a, b):
    return (a + b - 1) // b * b


def pack_params(weight, bias):
    """Precompute (once per weight) the lane-dense parameter tiles.

    weight: (out=8, in=8) in PyTorch convention; bias: (8,).
    Returns (w_bd, b_tiled): 128x128 block-diagonal W^T and (1, 128) bias.
    """
    w_bd = jnp.kron(jnp.eye(PACK, dtype=weight.dtype), weight.T)   # (128, 128)
    b_tiled = jnp.tile(bias, PACK).reshape(1, LANES)               # (1, 128)
    return w_bd, b_tiled


def gelu_linear_packed(x, w_bd, b_tiled):
    """x: (..., 8); w_bd / b_tiled from pack_params()."""
    orig_shape = x.shape
    m = 1
    for d in orig_shape[:-1]:
        m *= d
    x2 = x.reshape(m, IN_FEATURES)

    # --- pack 16 logical rows per 128-lane row (pad only to a multiple of 16) ---
    m_packed = _round_up(max(m, 1), PACK)
    if m_packed > m:
        x2 = jnp.pad(x2, ((0, m_packed - m), (0, 0)))
    rows_packed = m_packed // PACK
    x_packed = x2.reshape(rows_packed, LANES)

    # Tile size: big blocks for HBM roofline, but enough grid steps so both
    # v7x TensorCores get work; Pallas masks the partial last block.
    cap = 2048                                         # 1 MiB f32 per block
    tm = min(cap, max(8, _round_up(pl.cdiv(rows_packed, 8), 8)))
    grid = (pl.cdiv(rows_packed, tm),)

    flops = 2 * rows_packed * LANES * LANES + 10 * rows_packed * LANES
    bytes_accessed = 2 * rows_packed * LANES * 4 + LANES * LANES * 4 + LANES * 4

    out_packed = pl.pallas_call(
        _gelu_linear_kernel,
        out_shape=jax.ShapeDtypeStruct((rows_packed, LANES), x.dtype),
        grid=grid,
        in_specs=[
            pl.BlockSpec((tm, LANES), lambda i: (i, 0)),
            pl.BlockSpec((LANES, LANES), lambda i: (0, 0)),
            pl.BlockSpec((1, LANES), lambda i: (0, 0)),
        ],
        out_specs=pl.BlockSpec((tm, LANES), lambda i: (i, 0)),
        compiler_params=pltpu.CompilerParams(
            dimension_semantics=("parallel",)),
        cost_estimate=pl.CostEstimate(
            flops=flops,
            transcendentals=rows_packed * LANES,
            bytes_accessed=bytes_accessed),
    )(x_packed, w_bd, b_tiled)

    out = out_packed.reshape(m_packed, OUT_FEATURES)
    if m_packed > m:
        out = out[:m]
    return out.reshape(*orig_shape[:-1], OUT_FEATURES)


def gelu_linear(x, weight, bias):
    """Convenience wrapper matching the original module's forward."""
    w_bd, b_tiled = pack_params(weight, bias)
    return gelu_linear_packed(x, w_bd, b_tiled)


def reference(x, weight, bias):
    v1 = x @ weight.T + bias
    v2 = v1 * 0.5
    v3 = v1 + v1 * v1 * v1 * 0.044715
    v4 = v3 * 0.7978845608028654
    v5 = jnp.tanh(v4)
    return v2 * (v5 + 1.0)


if __name__ == "__main__":
    key = jax.random.PRNGKey(0)
    k_x, k_w, k_b = jax.random.split(key, 3)

    # Input consistent with the forward pass: last dim must be 8.
    x1 = jax.random.normal(k_x, (2, 4, 3, 8), dtype=jnp.float32)

    # Deterministic Linear(8, 8) init (PyTorch-style uniform bound 1/sqrt(fan_in)).
    bound = 1.0 / (IN_FEATURES ** 0.5)
    weight = jax.random.uniform(
        k_w, (OUT_FEATURES, IN_FEATURES), minval=-bound, maxval=bound,
        dtype=jnp.float32)
    bias = jax.random.uniform(
        k_b, (OUT_FEATURES,), minval=-bound, maxval=bound, dtype=jnp.float32)

    # Parameter packing hoisted out of the per-call path.
    w_bd, b_tiled = pack_params(weight, bias)

    out = gelu_linear_packed(x1, w_bd, b_tiled)
    jax.block_until_ready(out)

    ref = reference(x1, weight, bias)
    assert out.shape == (2, 4, 3, 8)
    assert jnp.allclose(out, ref, atol=1e-5, rtol=1e-5)

    print("KERNEL_OK")
</pallas_src>

<mosaic_0001>
module attributes {stable_mosaic.version = 11 : i64} {
  func.func @_gelu_linear_kernel(%arg0: i32, %arg1: memref<8x128xf32, #tpu.memory_space<vmem>>, %arg2: memref<128x128xf32, #tpu.memory_space<vmem>>, %arg3: memref<1x128xf32, #tpu.memory_space<vmem>>, %arg4: memref<8x128xf32, #tpu.memory_space<vmem>>) attributes {dimension_semantics = [#tpu.dimension_semantics<parallel>], iteration_bounds = array<i64: 1>, scalar_prefetch = 0 : i64, scratch_operands = 0 : i64, tpu.core_type = #tpu.core_type<tc>, window_params = [{transform_indices = @transform_0, window_bounds = array<i64: 8, 128>}, {pipeline_mode = #tpu.pipeline_mode<synchronous>, transform_indices = @transform_1, window_bounds = array<i64: 128, 128>}, {pipeline_mode = #tpu.pipeline_mode<synchronous>, transform_indices = @transform_2, window_bounds = array<i64: 1, 128>}, {transform_indices = @transform_3, window_bounds = array<i64: 8, 128>}]} {
    %c0 = arith.constant 0 : index
    %c0_0 = arith.constant 0 : index
    %0 = vector.load %arg1[%c0, %c0_0] : memref<8x128xf32, #tpu.memory_space<vmem>>, vector<8x128xf32>
    %c0_1 = arith.constant 0 : index
    %c0_2 = arith.constant 0 : index
    %1 = vector.load %arg2[%c0_1, %c0_2] : memref<128x128xf32, #tpu.memory_space<vmem>>, vector<128x128xf32>
    %c0_3 = arith.constant 0 : index
    %c0_4 = arith.constant 0 : index
    %2 = vector.load %arg3[%c0_3, %c0_4] : memref<1x128xf32, #tpu.memory_space<vmem>>, vector<1x128xf32>
    %cst = arith.constant dense<0.000000e+00> : vector<8x128xf32>
    %3 = tpu.matmul %0, %1, %cst {dimension_numbers = #tpu.dot_dimension_numbers<[1], [0], [0], [1], [0, 0, 1, 1], [], []>} : vector<8x128xf32>, vector<128x128xf32>, vector<8x128xf32> -> vector<8x128xf32>
    %4 = vector.broadcast %2 : vector<1x128xf32> to vector<8x128xf32>
    %5 = arith.addf %3, %4 : vector<8x128xf32>
    %6 = arith.mulf %5, %5 : vector<8x128xf32>
    %cst_5 = arith.constant 0.797884583 : f32
    %7 = vector.broadcast %cst_5 : f32 to vector<8x128xf32>
    %8 = arith.mulf %5, %7 : vector<8x128xf32>
    %9 = arith.mulf %5, %6 : vector<8x128xf32>
    %cst_6 = arith.constant 0.0356774069 : f32
    %10 = vector.broadcast %cst_6 : f32 to vector<8x128xf32>
    %11 = arith.mulf %9, %10 : vector<8x128xf32>
    %12 = arith.addf %8, %11 : vector<8x128xf32>
    %cst_7 = arith.constant 5.000000e-01 : f32
    %13 = vector.broadcast %cst_7 : f32 to vector<8x128xf32>
    %14 = arith.mulf %13, %5 : vector<8x128xf32>
    %15 = math.tanh %12 : vector<8x128xf32>
    %cst_8 = arith.constant 1.000000e+00 : f32
    %16 = vector.broadcast %cst_8 : f32 to vector<8x128xf32>
    %17 = arith.addf %15, %16 : vector<8x128xf32>
    %18 = arith.mulf %14, %17 : vector<8x128xf32>
    %c0_9 = arith.constant 0 : index
    %c0_10 = arith.constant 0 : index
    %19 = vector.load %arg4[%c0_9, %c0_10] : memref<8x128xf32, #tpu.memory_space<vmem>>, vector<8x128xf32>
    tpu.vector_store %arg4[%c0_9, %c0_10], %18 {strides = array<i32>} : memref<8x128xf32, #tpu.memory_space<vmem>>, vector<8x128xf32>,
    return
  }
  func.func @transform_0(%arg0: i32) -> (i32, i32) {
    %c0_i32 = arith.constant 0 : i32
    %c0_i32_0 = arith.constant 0 : i32
    return %arg0, %c0_i32 : i32, i32
  }
  func.func @transform_1(%arg0: i32) -> (i32, i32) {
    %c0_i32 = arith.constant 0 : i32
    %c0_i32_0 = arith.constant 0 : i32
    %c0_i32_1 = arith.constant 0 : i32
    return %c0_i32, %c0_i32_0 : i32, i32
  }
  func.func @transform_2(%arg0: i32) -> (i32, i32) {
    %c0_i32 = arith.constant 0 : i32
    %c0_i32_0 = arith.constant 0 : i32
    %c0_i32_1 = arith.constant 0 : i32
    return %c0_i32, %c0_i32_0 : i32, i32
  }
  func.func @transform_3(%arg0: i32) -> (i32, i32) {
    %c0_i32 = arith.constant 0 : i32
    %c0_i32_0 = arith.constant 0 : i32
    return %arg0, %c0_i32 : i32, i32
  }
}

</mosaic_0001>

<llo_original>
// kernel: tpu_custom_call.1
$region0: #{tpu_custom_call.1}
  #allocation0 [shape = 'u32[]', space=smem, size = 0x4, offset = 0x4, fixed_abs, tag = 'smem constant byte address 0x4 - core index']
  #allocation1 [shape = 'u32[144,128]{1,0:T(1,128)}', space=vmem, size = 0x12000, scoped, tag = 'internal scratch']
  %s0 = inlined_call_operand.hbm [shape: f32[2,128], index: 0, kind: input, shape index: {}]
  %s1 = inlined_call_operand.hbm [shape: f32[128,128], index: 1, kind: input, shape index: {}]
  %s2 = inlined_call_operand.vmem [shape: f32[1,128], index: 2, kind: input, shape index: {}]
  %s3 = inlined_call_operand.hbm [shape: f32[2,128], index: 3, kind: output, shape index: {}]
  %s4 = sld [smem:[#allocation0]]
  $region30: #{tpu_custom_call.1} parent=0
    _
  %s6 = ssub.s32 1, %s4
  %s7 = scalar_select 0, %s6, %s4
  $region1: #{tpu_custom_call.1} parent=0
    #allocation2 [shape = 'u8[4096]{0}', space=vmem, size = 0x1000, scoped, tag = 'input window, operand 0, single buffered']
    #allocation3 [shape = 's32[1]{0}', space=sflag, size = 0x4, scoped, tag = 'scoped memory for tpu_custom_call.1']
    #allocation4 [shape = 's32[1]{0}', space=sflag, size = 0x4, scoped, tag = 'scoped memory for tpu_custom_call.1']
    #allocation5 [shape = 'u8[65536]{0}', space=vmem, size = 0x10000, scoped, tag = 'input window, operand 1, single buffered']
    #allocation6 [shape = 's32[1]{0}', space=sflag, size = 0x4, scoped, tag = 'scoped memory for tpu_custom_call.1']
    #allocation7 [shape = 'u8[4096]{0}', space=vmem, size = 0x1000, scoped, tag = 'output window, operand 0, single buffered']
    %8 = vsyncpa [#allocation3], 0
    %9 = vsyncpa [#allocation6], 0
    %10 = vsyncpa [#allocation4], 0
    // Predicated region
    $region2: #{tpu_custom_call.1} parent=1 // pred_check
      _
    $region3: #{tpu_custom_call.1} parent=1 // pred_check_branch
      %12 = sbr.rel (0) target = $region5
    $region4: #{tpu_custom_call.1} parent=1 // pred_region
      %s14 = ssub.s32 128, 32
      %15 = vsyncadd [#allocation3], %s14
      %s16 = sshll.u32 [#allocation2], 4
      %s17 = int_to_ptr.vmem [resolvable:$true] %s16
      %22 = dma.hbm_to_vmem [thread:$0]  %s0, 32, %s17, [#allocation3], 32, 32, 2
    $region5: #{tpu_custom_call.1} parent=1 // pred_fallthru
      _
    // Predicated region
    $region6: #{tpu_custom_call.1} parent=1 // pred_check
      _
    $region7: #{tpu_custom_call.1} parent=1 // pred_check_branch
      %24 = sbr.rel (0) target = $region9
    $region8: #{tpu_custom_call.1} parent=1 // pred_region
      %s26 = ssub.s32 2048, 2048
      %27 = vsyncadd [#allocation6], %s26
      %s28 = sshll.u32 [#allocation5], 4
      %s29 = int_to_ptr.vmem [resolvable:$true] %s28
      %34 = dma.hbm_to_vmem [thread:$0]  %s1, 2048, %s29, [#allocation6], 128, 128, 8
    $region9: #{tpu_custom_call.1} parent=1 // pred_fallthru
      _
    // Predicated region
    $region10: #{tpu_custom_call.1} parent=1 // pred_check
      _
    $region11: #{tpu_custom_call.1} parent=1 // pred_check_branch
      %36 = sbr.rel (0) target = $region13
    $region12: #{tpu_custom_call.1} parent=1 // pred_region
      _
    $region13: #{tpu_custom_call.1} parent=1 // pred_fallthru
      _
    // Predicated region
    $region14: #{tpu_custom_call.1} parent=1 // pred_check
      _
    $region15: #{tpu_custom_call.1} parent=1 // pred_check_branch
      %38 = sbr.rel (0) target = $region17
    $region16: #{tpu_custom_call.1} parent=1 // pred_region
      %39 = dma.done [#allocation3], 128
    $region17: #{tpu_custom_call.1} parent=1 // pred_fallthru
      _
    // Predicated region
    $region18: #{tpu_custom_call.1} parent=1 // pred_check
      _
    $region19: #{tpu_custom_call.1} parent=1 // pred_check_branch
      %41 = sbr.rel (0) target = $region21
    $region20: #{tpu_custom_call.1} parent=1 // pred_region
      %42 = dma.done [#allocation6], 2048
    $region21: #{tpu_custom_call.1} parent=1 // pred_fallthru
      _
    %v43 = vld [vmem:[#allocation2] sm:$0xff]
    %v44 = vld [vmem:[#allocation5] sm:$0xff]
    %v45 = vld [vmem:[#allocation5 + $0x8] sm:$0xff]
    %v46 = vld [vmem:[#allocation5 + $0x10] sm:$0xff]
    %v47 = vld [vmem:[#allocation5 + $0x18] sm:$0xff]
    %v48 = vld [vmem:[#allocation5 + $0x20] sm:$0xff]
    %v49 = vld [vmem:[#allocation5 + $0x28] sm:$0xff]
    %v50 = vld [vmem:[#allocation5 + $0x30] sm:$0xff]
    %v51 = vld [vmem:[#allocation5 + $0x38] sm:$0xff]
    %v52 = vld [vmem:[#allocation5 + $0x40] sm:$0xff]
    %v53 = vld [vmem:[#allocation5 + $0x48] sm:$0xff]
    %v54 = vld [vmem:[#allocation5 + $0x50] sm:$0xff]
    %v55 = vld [vmem:[#allocation5 + $0x58] sm:$0xff]
    %v56 = vld [vmem:[#allocation5 + $0x60] sm:$0xff]
    %v57 = vld [vmem:[#allocation5 + $0x68] sm:$0xff]
    %v58 = vld [vmem:[#allocation5 + $0x70] sm:$0xff]
    %v59 = vld [vmem:[#allocation5 + $0x78] sm:$0xff]
    %v60 = vld [vmem:[%s2] sm:$0x1]
    %v62 = vlaneseq
    %v63 = vshrl.u32 %v62, 7
    %v64 = vsub.s32 0, %v63
    %v65 = vrot.slane %v60, %v64
    %67 = vmatprep.subr.mxu0 0.0
    %68 = vmatpush1.msra.mxu0 %v59
    %69 = vmatprep.subr.mxu0 0.0
    %70 = vmatpush1.msra.mxu0 %v58
    %71 = vmatprep.subr.mxu0 0.0
    %72 = vmatpush1.msra.mxu0 %v57
    %73 = vmatprep.subr.mxu0 0.0
    %74 = vmatpush1.msra.mxu0 %v56
    %75 = vmatprep.subr.mxu0 0.0
    %76 = vmatpush1.msra.mxu0 %v55
    %77 = vmatprep.subr.mxu0 0.0
    %78 = vmatpush1.msra.mxu0 %v54
    %79 = vmatprep.subr.mxu0 0.0
    %80 = vmatpush1.msra.mxu0 %v53
    %81 = vmatprep.subr.mxu0 0.0
    %82 = vmatpush1.msra.mxu0 %v52
    %83 = vmatprep.subr.mxu0 0.0
    %84 = vmatpush1.msra.mxu0 %v51
    %85 = vmatprep.subr.mxu0 0.0
    %86 = vmatpush1.msra.mxu0 %v50
    %87 = vmatprep.subr.mxu0 0.0
    %88 = vmatpush1.msra.mxu0 %v49
    %89 = vmatprep.subr.mxu0 0.0
    %90 = vmatpush1.msra.mxu0 %v48
    %91 = vmatprep.subr.mxu0 0.0
    %92 = vmatpush1.msra.mxu0 %v47
    %93 = vmatprep.subr.mxu0 0.0
    %94 = vmatpush1.msra.mxu0 %v46
    %95 = vmatprep.subr.mxu0 0.0
    %96 = vmatpush1.msra.mxu0 %v45
    %97 = vmatprep.subr.mxu0 0.0
    %98 = vmatpush1.msra.mxu0 %v44
    %99 = vmatprep.subr.mxu0 0.0
    %100 = vmatpush2.msra.mxu0 0.0
    %101 = vmatprep.subr.mxu0 0.0
    %102 = vmatpush2.msra.mxu0 0.0
    %103 = vmatprep.subr.mxu0 0.0
    %104 = vmatpush2.msra.mxu0 0.0
    %105 = vmatprep.subr.mxu0 0.0
    %106 = vmatpush2.msra.mxu0 0.0
    %107 = vmatprep.subr.mxu0 0.0
    %108 = vmatpush2.msra.mxu0 0.0
    %109 = vmatprep.subr.mxu0 0.0
    %110 = vmatpush2.msra.mxu0 0.0
    %111 = vmatprep.subr.mxu0 0.0
    %112 = vmatpush2.msra.mxu0 0.0
    %113 = vmatprep.subr.mxu0 0.0
    %114 = vmatpush2.msra.mxu0 0.0
    %115 = vmatprep.subr.mxu0 0.0
    %116 = vmatpush2.msra.mxu0 0.0
    %117 = vmatprep.subr.mxu0 0.0
    %118 = vmatpush2.msra.mxu0 0.0
    %119 = vmatprep.subr.mxu0 0.0
    %120 = vmatpush2.msra.mxu0 0.0
    %121 = vmatprep.subr.mxu0 0.0
    %122 = vmatpush2.msra.mxu0 0.0
    %123 = vmatprep.subr.mxu0 0.0
    %124 = vmatpush2.msra.mxu0 0.0
    %125 = vmatprep.subr.mxu0 0.0
    %126 = vmatpush2.msra.mxu0 0.0
    %127 = vmatprep.subr.mxu0 0.0
    %128 = vmatpush2.msra.mxu0 0.0
    %129 = vmatprep.subr.mxu0 0.0
    %130 = vmatpush2.msra.mxu0 0.0
    %131 = vmatprep.mubr.f32.mxu0 0.0
    %132 = vmatmul.mubr.f32.gmra.mxu0 %v43
    %v133 = vpop.f32.mrf.mxu0
    %v134 = vadd.f32 %v65, %v133
    %v135 = vpop.f32.mrf.mxu0
    %136 = vdwg.mxu0
    %v137 = vmul.f32 %v134, %v134
    %v138 = vmul.f32 %v134, 0.7978846
    %v139 = vmul.f32 %v134, %v137
    %v140 = vmul.f32 %v139, 0.035677407
    %v141 = vadd.f32 %v138, %v140
    %v142 = vmul.f32 %v134, 0.5
    %v143 = vtanh.pop %v141
    %v144 = vadd.f32 %v143, 1.0
    %v145 = vmul.f32 %v142, %v144
    %146 = vst [vmem:[#allocation7] sm:$0xff] %v145
    // Predicated region
    $region22: #{tpu_custom_call.1} parent=1 // pred_check
      _
    $region23: #{tpu_custom_call.1} parent=1 // pred_check_branch
      %148 = sbr.rel (0) target = $region25
    $region24: #{tpu_custom_call.1} parent=1 // pred_region
      %s150 = ssub.s32 128, 32
      %151 = vsyncadd [#allocation4], %s150
      %s152 = sshll.u32 [#allocation7], 4
      %s153 = int_to_ptr.vmem [resolvable:$true] %s152
      %158 = dma.vmem_to_hbm [thread:$0]  %s153, 32, %s3, [#allocation4], 32, 32, 2
    $region25: #{tpu_custom_call.1} parent=1 // pred_fallthru
      _
    // Predicated region
    $region26: #{tpu_custom_call.1} parent=1 // pred_check
      _
    $region27: #{tpu_custom_call.1} parent=1 // pred_check_branch
      %160 = sbr.rel (0) target = $region29
    $region28: #{tpu_custom_call.1} parent=1 // pred_region
      %161 = dma.done [#allocation4], 128
    $region29: #{tpu_custom_call.1} parent=1 // pred_fallthru
      _
    %162 = vsyncpa [#allocation3], 1
    %163 = vsyncpa [#allocation6], 1
    %164 = vsyncpa [#allocation4], 1

</llo_original>
